<compile_context>
chip_gen: v5e
topology: v5e:2x2
jax: 0.10.0
libtpu: 0.0.40
codegen_flags: <defaults>
</compile_context>

<pallas_src>
import math
import functools

import jax
import jax.numpy as jnp
from jax import lax
from jax.experimental import pallas as pl
from jax.experimental.pallas import tpu as pltpu

PAD_ID = 1  # RoBERTa padding_idx


def _default_vmem_limit():
    """Generation-aware scoped-VMEM request: ~half of physical, capped at 64 MiB.
    v5e/v6e (128 MiB) -> 64 MiB, v7x (64 MiB) -> 32 MiB, unknown -> 32 MiB."""
    cap = 64 * 1024 * 1024
    try:
        info = pltpu.get_tpu_info()
        cap = int(getattr(info, "vmem_capacity_bytes", cap))
    except Exception:
        pass
    return min(cap // 2, 64 * 1024 * 1024)


_VMEM_LIMIT = _default_vmem_limit()


def _round_up(x, m):
    return ((x + m - 1) // m) * m


def _row_tile(M, target, align=16):
    """Row (sublane) tile: `target` when M is large, otherwise M rounded up to
    the bf16 sublane pack (16).  Returns (tile, padded_M), padded_M % tile == 0."""
    tm = target if M >= target else _round_up(M, align)
    return tm, _round_up(M, tm)


def _pick_tile(dim, target, align):
    """Largest tile <= target that divides `dim` and is a multiple of `align`;
    falls back to the full dim (always a legal block shape)."""
    if dim <= target or dim % align != 0:
        return dim
    t = (min(target, dim) // align) * align
    while t >= align:
        if dim % t == 0:
            return t
        t -= align
    return dim


def _pad_rows(x, Mp):
    M = x.shape[0]
    return x if Mp == M else jnp.pad(x, ((0, Mp - M), (0, 0)))


def _gelu_tanh(y):
    # tanh-approx GELU: exp/tanh run in the otherwise-idle EUP slot.
    # Deliberate (tiny) deviation from HF's exact erf-based GELU.
    c = math.sqrt(2.0 / math.pi)
    return 0.5 * y * (1.0 + jnp.tanh(c * (y + 0.044715 * (y * y * y))))


# ---------------------------------------------------------------------------
# Linear (single-shot K, optional GELU epilogue) — 2-D fully parallel grid
# ---------------------------------------------------------------------------

def _linear_kernel(x_ref, w_ref, b_ref, o_ref, *, activation):
    y = jnp.dot(x_ref[...], w_ref[...], preferred_element_type=jnp.float32)
    y = y + b_ref[...].astype(jnp.float32)
    if activation == "gelu":
        y = _gelu_tanh(y)
    o_ref[...] = y.astype(o_ref.dtype)


def linear(x, w, b, activation=None, out_dtype=None,
           tm_target=512, tn_target=512):
    """y = act(x @ w + b).  x: (M, K) bf16, w: (K, N) bf16, b: (N,) f32.
    K is never tiled (always fits in VMEM for this model), so there is no
    reduction axis, no accumulator scratch and no pl.when phases."""
    M, K = x.shape
    K2, N = w.shape
    assert K == K2
    out_dtype = out_dtype if out_dtype is not None else x.dtype

    tm, Mp = _row_tile(M, tm_target)
    tn = _pick_tile(N, tn_target, 128)
    grid = (Mp // tm, N // tn)

    cost = pl.CostEstimate(
        flops=2 * M * N * K,
        transcendentals=(M * N if activation == "gelu" else 0),
        bytes_accessed=(M * K * x.dtype.itemsize + K * N * w.dtype.itemsize
                        + M * N * jnp.dtype(out_dtype).itemsize),
    )
    out = pl.pallas_call(
        functools.partial(_linear_kernel, activation=activation),
        grid=grid,
        in_specs=[
            pl.BlockSpec((tm, K), lambda i, j: (i, 0)),
            pl.BlockSpec((K, tn), lambda i, j: (0, j)),
            pl.BlockSpec((1, tn), lambda i, j: (0, j)),
        ],
        out_specs=pl.BlockSpec((tm, tn), lambda i, j: (i, j)),
        out_shape=jax.ShapeDtypeStruct((Mp, N), out_dtype),
        compiler_params=pltpu.CompilerParams(
            dimension_semantics=("parallel", "parallel"),
            vmem_limit_bytes=_VMEM_LIMIT,
        ),
        cost_estimate=cost,
    )(_pad_rows(x, Mp), w, b.reshape(1, N).astype(jnp.float32))
    return out if Mp == M else out[:M]


# ---------------------------------------------------------------------------
# Linear with fused residual-add + LayerNorm epilogue (full-row output block)
# ---------------------------------------------------------------------------

def _linear_res_ln_kernel(x_ref, w_ref, b_ref, r_ref, g_ref, bb_ref, o_ref, *, eps):
    y = jnp.dot(x_ref[...], w_ref[...], preferred_element_type=jnp.float32)
    y = y + b_ref[...].astype(jnp.float32) + r_ref[...].astype(jnp.float32)
    mu = jnp.mean(y, axis=-1, keepdims=True)
    var = jnp.mean(jnp.square(y - mu), axis=-1, keepdims=True)
    yn = (y - mu) * lax.rsqrt(var + eps)
    o_ref[...] = (yn * g_ref[...].astype(jnp.float32)
                  + bb_ref[...].astype(jnp.float32)).astype(o_ref.dtype)


def linear_residual_layernorm(x, w, b, residual, gamma, beta, *,
                              eps=1e-5, out_dtype=None, tm_target=512):
    """LayerNorm((x @ w + b) + residual).  Output block spans the full row
    (N = hidden), so the LN reduction is local to the epilogue and the
    intermediate never touches HBM."""
    M, K = x.shape
    K2, N = w.shape
    assert K == K2 and residual.shape == (M, N)
    out_dtype = out_dtype if out_dtype is not None else x.dtype

    tm, Mp = _row_tile(M, tm_target)
    grid = (Mp // tm,)

    cost = pl.CostEstimate(
        flops=2 * M * N * K + 10 * M * N,
        transcendentals=M,
        bytes_accessed=(M * K * x.dtype.itemsize + K * N * w.dtype.itemsize
                        + 2 * M * N * jnp.dtype(out_dtype).itemsize),
    )
    out = pl.pallas_call(
        functools.partial(_linear_res_ln_kernel, eps=eps),
        grid=grid,
        in_specs=[
            pl.BlockSpec((tm, K), lambda i: (i, 0)),
            pl.BlockSpec((K, N), lambda i: (0, 0)),
            pl.BlockSpec((1, N), lambda i: (0, 0)),
            pl.BlockSpec((tm, N), lambda i: (i, 0)),
            pl.BlockSpec((1, N), lambda i: (0, 0)),
            pl.BlockSpec((1, N), lambda i: (0, 0)),
        ],
        out_specs=pl.BlockSpec((tm, N), lambda i: (i, 0)),
        out_shape=jax.ShapeDtypeStruct((Mp, N), out_dtype),
        compiler_params=pltpu.CompilerParams(
            dimension_semantics=("parallel",),
            vmem_limit_bytes=_VMEM_LIMIT,
        ),
        cost_estimate=cost,
    )(_pad_rows(x, Mp), w, b.reshape(1, N).astype(jnp.float32),
      _pad_rows(residual, Mp), gamma.reshape(1, N).astype(jnp.float32),
      beta.reshape(1, N).astype(jnp.float32))
    return out if Mp == M else out[:M]


# ---------------------------------------------------------------------------
# Standalone LayerNorm (embedding LN only), row-tiled
# ---------------------------------------------------------------------------

def _ln_kernel(x_ref, g_ref, b_ref, o_ref, *, eps):
    x = x_ref[...].astype(jnp.float32)
    mu = jnp.mean(x, axis=-1, keepdims=True)
    var = jnp.mean(jnp.square(x - mu), axis=-1, keepdims=True)
    y = (x - mu) * lax.rsqrt(var + eps)
    o_ref[...] = (y * g_ref[...].astype(jnp.float32)
                  + b_ref[...].astype(jnp.float32)).astype(o_ref.dtype)


def layer_norm(x, gamma, beta, *, eps=1e-5, out_dtype=None, tm_target=512):
    M, H = x.shape
    out_dtype = out_dtype if out_dtype is not None else x.dtype
    tm, Mp = _row_tile(M, tm_target)
    grid = (Mp // tm,)
    out = pl.pallas_call(
        functools.partial(_ln_kernel, eps=eps),
        grid=grid,
        in_specs=[
            pl.BlockSpec((tm, H), lambda i: (i, 0)),
            pl.BlockSpec((1, H), lambda i: (0, 0)),
            pl.BlockSpec((1, H), lambda i: (0, 0)),
        ],
        out_specs=pl.BlockSpec((tm, H), lambda i: (i, 0)),
        out_shape=jax.ShapeDtypeStruct((Mp, H), out_dtype),
        compiler_params=pltpu.CompilerParams(
            dimension_semantics=("parallel",),
            vmem_limit_bytes=_VMEM_LIMIT,
        ),
    )(_pad_rows(x, Mp), gamma.reshape(1, H), beta.reshape(1, H))
    return out if Mp == M else out[:M]


# ---------------------------------------------------------------------------
# Attention: reads the fused (B, S, 3H) QKV directly, per-head slices in VMEM,
# single-pass softmax over the full key length, merged-head output layout.
# ---------------------------------------------------------------------------

def _attention_kernel(qkv_q_ref, qkv_kv_ref, bias_ref, o_ref, *,
                      n_heads, d_head, scale):
    """qkv_q_ref : (1, tq, 3H) bf16  -- Q rows of the fused QKV activation
       qkv_kv_ref: (1, S,  3H) bf16  -- all keys/values (same array)
       bias_ref  : (1, 1,  S)  f32   -- additive key-padding mask
       o_ref     : (1, tq, H)        -- context, merged-head layout
    Heads are unrolled statically; per-head slices relayout only inside VMEM.
    Every query row has at least one unmasked key (position 0), so the softmax
    denominator is well conditioned even with heavy padding."""
    hidden = n_heads * d_head
    bias = bias_ref[0].astype(jnp.float32)                       # (1, S)
    outs = []
    for h in range(n_heads):
        lo = h * d_head
        q = qkv_q_ref[0, :, lo:lo + d_head] * scale              # scale folded into q
        k = qkv_kv_ref[0, :, hidden + lo:hidden + lo + d_head]
        v = qkv_kv_ref[0, :, 2 * hidden + lo:2 * hidden + lo + d_head]
        s = lax.dot_general(q, k, (((1,), (1,)), ((), ())),
                            preferred_element_type=jnp.float32)  # (tq, S)
        s = s + bias
        m = jnp.max(s, axis=-1, keepdims=True)
        p = jnp.exp(s - m)
        l = jnp.sum(p, axis=-1, keepdims=True)
        ctx = jnp.dot(p.astype(v.dtype), v, preferred_element_type=jnp.float32)
        outs.append(ctx * pl.reciprocal(l, approx=False))
    # single lane-dense store of the merged-head row block
    o_ref[0] = jnp.concatenate(outs, axis=-1).astype(o_ref.dtype)


def attention(qkv, bias, *, n_heads, d_head, scale, tq_target=512):
    """qkv: (B, S, 3H) bf16 fused projection, bias: (B, 1, S) f32 mask.
    Returns (B, S, H) context already merged over heads (no XLA transposes)."""
    # TODO(synk): for S >~ 1k a kv-tiled online-softmax variant would be
    # needed; XLM-R caps S at 512 so the single-pass form is sufficient here.
    B, S, threeH = qkv.shape
    H = n_heads * d_head
    tq = _pick_tile(S, tq_target, 16)
    grid = (B, S // tq)

    cost = pl.CostEstimate(
        flops=4 * B * n_heads * S * S * d_head,
        transcendentals=B * n_heads * S * S,
        bytes_accessed=(2 * B * S * threeH * qkv.dtype.itemsize
                        + B * S * bias.dtype.itemsize
                        + B * S * H * qkv.dtype.itemsize),
    )
    kern = functools.partial(_attention_kernel, n_heads=n_heads,
                             d_head=d_head, scale=scale)
    return pl.pallas_call(
        kern,
        grid=grid,
        in_specs=[
            pl.BlockSpec((1, tq, threeH), lambda b, qi: (b, qi, 0)),
            pl.BlockSpec((1, S, threeH), lambda b, qi: (b, 0, 0)),
            pl.BlockSpec((1, 1, S), lambda b, qi: (b, 0, 0)),
        ],
        out_specs=pl.BlockSpec((1, tq, H), lambda b, qi: (b, qi, 0)),
        out_shape=jax.ShapeDtypeStruct((B, S, H), qkv.dtype),
        compiler_params=pltpu.CompilerParams(
            dimension_semantics=("parallel", "parallel"),
            vmem_limit_bytes=_VMEM_LIMIT,
        ),
        cost_estimate=cost,
    )(qkv, qkv, bias)


# ---------------------------------------------------------------------------
# Parameters (deterministic synthetic init, bf16 matmul weights)
# ---------------------------------------------------------------------------

def init_params(key, vocab, max_pos, hidden, n_layers, n_heads, inter, num_labels):
    keys = iter(jax.random.split(key, 8 + 8 * n_layers))

    def dense(kk, i, o):
        return (0.02 * jax.random.normal(kk, (i, o), jnp.float32)).astype(jnp.bfloat16)

    n_pad = _round_up(num_labels, 128)
    cls_w = dense(next(keys), hidden, num_labels)
    p = {
        "word_emb": (0.02 * jax.random.normal(next(keys), (vocab, hidden),
                                              jnp.float32)).astype(jnp.bfloat16),
        "pos_emb": (0.02 * jax.random.normal(next(keys), (max_pos, hidden),
                                             jnp.float32)).astype(jnp.bfloat16),
        "type_emb": (0.02 * jax.random.normal(next(keys), (1, hidden),
                                              jnp.float32)).astype(jnp.bfloat16),
        "emb_ln_g": jnp.ones((hidden,), jnp.float32),
        "emb_ln_b": jnp.zeros((hidden,), jnp.float32),
        # classifier weight padded to a 128-lane output once at init (hoisted
        # out of the per-call forward path); extra columns are zero.
        "cls_w": jnp.pad(cls_w, ((0, 0), (0, n_pad - num_labels))),
        "cls_b": jnp.zeros((n_pad,), jnp.float32),
        "num_labels": num_labels,
        "layers": [],
    }
    for _ in range(n_layers):
        kq, kk_, kv, ko, k1, k2 = (next(keys) for _ in range(6))
        qkv_w = jnp.concatenate([dense(kq, hidden, hidden),
                                 dense(kk_, hidden, hidden),
                                 dense(kv, hidden, hidden)], axis=1)  # (H, 3H)
        p["layers"].append({
            "qkv_w": qkv_w,
            "qkv_b": jnp.zeros((3 * hidden,), jnp.float32),
            "o_w": dense(ko, hidden, hidden), "o_b": jnp.zeros((hidden,), jnp.float32),
            "attn_ln_g": jnp.ones((hidden,), jnp.float32),
            "attn_ln_b": jnp.zeros((hidden,), jnp.float32),
            "ffn_w1": dense(k1, hidden, inter), "ffn_b1": jnp.zeros((inter,), jnp.float32),
            "ffn_w2": dense(k2, inter, hidden), "ffn_b2": jnp.zeros((hidden,), jnp.float32),
            "ffn_ln_g": jnp.ones((hidden,), jnp.float32),
            "ffn_ln_b": jnp.zeros((hidden,), jnp.float32),
        })
    return p


# ---------------------------------------------------------------------------
# Forward pass (mirrors VietnameseAccentClassifier.forward, use_crf=False)
# ---------------------------------------------------------------------------

def forward(params, input_ids, attention_mask, accent_labels=None, *, n_heads):
    B, S = input_ids.shape
    H = params["word_emb"].shape[1]
    dH = H // n_heads
    num_labels = params["num_labels"]

    # ---- embeddings (RoBERTa padding-aware position ids); gathers stay in XLA
    nonpad = (input_ids != PAD_ID).astype(jnp.int32)
    position_ids = jnp.cumsum(nonpad, axis=1) * nonpad + PAD_ID
    emb = (jnp.take(params["word_emb"], input_ids, axis=0).astype(jnp.float32)
           + jnp.take(params["pos_emb"], position_ids, axis=0).astype(jnp.float32)
           + params["type_emb"][0].astype(jnp.float32))
    x = layer_norm(emb.reshape(B * S, H), params["emb_ln_g"], params["emb_ln_b"],
                   out_dtype=jnp.bfloat16)
    # dropout: identity at inference (eval mode)

    # ---- additive attention bias from the padding mask (shared by all heads)
    bias = ((1.0 - attention_mask.astype(jnp.float32)) * -1e9).reshape(B, 1, S)
    scale = 1.0 / math.sqrt(dH)

    # ---- transformer layers
    for lyr in params["layers"]:
        qkv = linear(x, lyr["qkv_w"], lyr["qkv_b"])               # fused QKV, (B*S, 3H)
        ctx = attention(qkv.reshape(B, S, 3 * H), bias,
                        n_heads=n_heads, d_head=dH, scale=scale)  # (B, S, H)
        x = linear_residual_layernorm(ctx.reshape(B * S, H), lyr["o_w"], lyr["o_b"],
                                      residual=x, gamma=lyr["attn_ln_g"],
                                      beta=lyr["attn_ln_b"])
        h1 = linear(x, lyr["ffn_w1"], lyr["ffn_b1"], activation="gelu")
        x = linear_residual_layernorm(h1, lyr["ffn_w2"], lyr["ffn_b2"],
                                      residual=x, gamma=lyr["ffn_ln_g"],
                                      beta=lyr["ffn_ln_b"])

    # ---- classifier head (weight pre-padded to 128 lanes at init)
    logits_pad = linear(x, params["cls_w"], params["cls_b"], out_dtype=jnp.float32)
    logits = logits_pad[:, :num_labels].reshape(B, S, num_labels)

    # ---- optional cross-entropy loss (ignore_index=-100), plain-JAX glue
    loss = None
    if accent_labels is not None:
        labels_flat = jnp.where(attention_mask.reshape(-1) == 1,
                                accent_labels.reshape(-1), -100)
        valid = labels_flat != -100
        logits_flat = logits.reshape(-1, num_labels)
        logp = jax.nn.log_softmax(logits_flat.astype(jnp.float32), axis=-1)
        safe = jnp.clip(labels_flat, 0, num_labels - 1)
        nll = -jnp.take_along_axis(logp, safe[:, None], axis=-1)[:, 0]
        loss = jnp.sum(jnp.where(valid, nll, 0.0)) / jnp.maximum(jnp.sum(valid), 1)

    return {"loss": loss, "logits": logits}


# TODO(synk): CRF path (use_crf=True) not implemented — sequential Viterbi /
# forward algorithm has no clean single-kernel Pallas equivalent here.


# ---------------------------------------------------------------------------
# Demo
# ---------------------------------------------------------------------------

if __name__ == "__main__":
    key = jax.random.PRNGKey(0)
    B, S = 2, 8                      # batch, sequence length
    H, N_HEADS, N_LAYERS, INTER = 32, 4, 2, 64
    VOCAB, NUM_LABELS = 64, 6

    pkey, ikey, lkey = jax.random.split(key, 3)
    params = init_params(pkey, VOCAB, S + 2, H, N_LAYERS, N_HEADS, INTER, NUM_LABELS)

    input_ids = jax.random.randint(ikey, (B, S), 2, VOCAB, dtype=jnp.int32)
    attention_mask = jnp.ones((B, S), jnp.int32)
    # pad the tail of the second sequence
    input_ids = input_ids.at[1, 5:].set(PAD_ID)
    attention_mask = attention_mask.at[1, 5:].set(0)
    accent_labels = jax.random.randint(lkey, (B, S), 0, NUM_LABELS, dtype=jnp.int32)

    out = forward(params, input_ids, attention_mask, accent_labels, n_heads=N_HEADS)
    jax.block_until_ready(out["logits"])
    jax.block_until_ready(out["loss"])

    assert out["logits"].shape == (B, S, NUM_LABELS)
    assert bool(jnp.isfinite(out["loss"]))
    print("KERNEL_OK")
</pallas_src>

<mosaic_0001>
module attributes {stable_mosaic.version = 11 : i64} {
  func.func @_ln_kernel(%arg0: i32, %arg1: memref<16x32xf32, #tpu.memory_space<vmem>>, %arg2: memref<1x32xf32, #tpu.memory_space<vmem>>, %arg3: memref<1x32xf32, #tpu.memory_space<vmem>>, %arg4: memref<16x32xbf16, #tpu.memory_space<vmem>>) attributes {dimension_semantics = [#tpu.dimension_semantics<parallel>], iteration_bounds = array<i64: 1>, scalar_prefetch = 0 : i64, scratch_operands = 0 : i64, tpu.core_type = #tpu.core_type<tc>, window_params = [{transform_indices = @transform_0, window_bounds = array<i64: 16, 32>}, {pipeline_mode = #tpu.pipeline_mode<synchronous>, transform_indices = @transform_1, window_bounds = array<i64: 1, 32>}, {pipeline_mode = #tpu.pipeline_mode<synchronous>, transform_indices = @transform_2, window_bounds = array<i64: 1, 32>}, {transform_indices = @transform_3, window_bounds = array<i64: 16, 32>}]} {
    %c0 = arith.constant 0 : index
    %c0_0 = arith.constant 0 : index
    %0 = vector.load %arg1[%c0, %c0_0] : memref<16x32xf32, #tpu.memory_space<vmem>>, vector<16x32xf32>
    %cst = arith.constant dense<0.000000e+00> : vector<16xf32>
    %1 = vector.multi_reduction <add>, %0, %cst [1] : vector<16x32xf32> to vector<16xf32>
    %2 = vector.shape_cast %1 : vector<16xf32> to vector<16x1xf32>
    %cst_1 = arith.constant 3.200000e+01 : f32
    %3 = vector.broadcast %cst_1 : f32 to vector<16x1xf32>
    %4 = arith.divf %2, %3 : vector<16x1xf32>
    %5 = vector.broadcast %4 : vector<16x1xf32> to vector<16x32xf32>
    %6 = arith.subf %0, %5 : vector<16x32xf32>
    %7 = arith.mulf %6, %6 : vector<16x32xf32>
    %cst_2 = arith.constant dense<0.000000e+00> : vector<16xf32>
    %8 = vector.multi_reduction <add>, %7, %cst_2 [1] : vector<16x32xf32> to vector<16xf32>
    %9 = vector.shape_cast %8 : vector<16xf32> to vector<16x1xf32>
    %cst_3 = arith.constant 3.200000e+01 : f32
    %10 = vector.broadcast %cst_3 : f32 to vector<16x1xf32>
    %11 = arith.divf %9, %10 : vector<16x1xf32>
    %12 = vector.broadcast %4 : vector<16x1xf32> to vector<16x32xf32>
    %13 = arith.subf %0, %12 : vector<16x32xf32>
    %cst_4 = arith.constant 9.99999974E-6 : f32
    %14 = vector.broadcast %cst_4 : f32 to vector<16x1xf32>
    %15 = arith.addf %11, %14 : vector<16x1xf32>
    %16 = math.rsqrt %15 : vector<16x1xf32>
    %17 = vector.broadcast %16 : vector<16x1xf32> to vector<16x32xf32>
    %18 = arith.mulf %13, %17 : vector<16x32xf32>
    %c0_5 = arith.constant 0 : index
    %c0_6 = arith.constant 0 : index
    %19 = vector.load %arg2[%c0_5, %c0_6] : memref<1x32xf32, #tpu.memory_space<vmem>>, vector<1x32xf32>
    %20 = vector.broadcast %19 : vector<1x32xf32> to vector<16x32xf32>
    %21 = arith.mulf %18, %20 : vector<16x32xf32>
    %c0_7 = arith.constant 0 : index
    %c0_8 = arith.constant 0 : index
    %22 = vector.load %arg3[%c0_7, %c0_8] : memref<1x32xf32, #tpu.memory_space<vmem>>, vector<1x32xf32>
    %23 = vector.broadcast %22 : vector<1x32xf32> to vector<16x32xf32>
    %24 = arith.addf %21, %23 : vector<16x32xf32>
    %25 = arith.truncf %24 : vector<16x32xf32> to vector<16x32xbf16>
    %c0_9 = arith.constant 0 : index
    %c0_10 = arith.constant 0 : index
    %26 = vector.load %arg4[%c0_9, %c0_10] : memref<16x32xbf16, #tpu.memory_space<vmem>>, vector<16x32xbf16>
    tpu.vector_store %arg4[%c0_9, %c0_10], %25 {strides = array<i32>} : memref<16x32xbf16, #tpu.memory_space<vmem>>, vector<16x32xbf16>,
    return
  }
  func.func @transform_0(%arg0: i32) -> (i32, i32) {
    %c0_i32 = arith.constant 0 : i32
    %c0_i32_0 = arith.constant 0 : i32
    return %arg0, %c0_i32 : i32, i32
  }
  func.func @transform_1(%arg0: i32) -> (i32, i32) {
    %c0_i32 = arith.constant 0 : i32
    %c0_i32_0 = arith.constant 0 : i32
    %c0_i32_1 = arith.constant 0 : i32
    return %c0_i32, %c0_i32_0 : i32, i32
  }
  func.func @transform_2(%arg0: i32) -> (i32, i32) {
    %c0_i32 = arith.constant 0 : i32
    %c0_i32_0 = arith.constant 0 : i32
    %c0_i32_1 = arith.constant 0 : i32
    return %c0_i32, %c0_i32_0 : i32, i32
  }
  func.func @transform_3(%arg0: i32) -> (i32, i32) {
    %c0_i32 = arith.constant 0 : i32
    %c0_i32_0 = arith.constant 0 : i32
    return %arg0, %c0_i32 : i32, i32
  }
}

</mosaic_0001>

<llo_original>
// kernel: tpu_custom_call.1
$region0: #{tpu_custom_call.1}
  #allocation0 [shape = 'u32[]', space=smem, size = 0x4, offset = 0x4, fixed_abs, tag = 'smem constant byte address 0x4 - core index']
  #allocation1 [shape = 'u32[72,128]{1,0:T(1,128)}', space=vmem, size = 0x9000, scoped, tag = 'internal scratch']
  %s0 = inlined_call_operand.hbm [shape: f32[16,32], index: 0, kind: input, shape index: {}]
  %s1 = inlined_call_operand.hbm [shape: f32[1,32], index: 1, kind: input, shape index: {}]
  %s2 = inlined_call_operand.vmem [shape: f32[1,32], index: 2, kind: input, shape index: {}]
  %s3 = inlined_call_operand.hbm [shape: bf16[16,32], index: 3, kind: output, shape index: {}]
  %s4 = sld [smem:[#allocation0]]
  $region30: #{tpu_custom_call.1} parent=0
    _
  %s6 = ssub.s32 1, %s4
  %s7 = scalar_select 0, %s6, %s4
  $region1: #{tpu_custom_call.1} parent=0
    #allocation2 [shape = 'u8[8192]{0}', space=vmem, size = 0x2000, scoped, tag = 'input window, operand 0, single buffered']
    #allocation3 [shape = 's32[1]{0}', space=sflag, size = 0x4, scoped, tag = 'scoped memory for tpu_custom_call.1']
    #allocation4 [shape = 's32[1]{0}', space=sflag, size = 0x4, scoped, tag = 'scoped memory for tpu_custom_call.1']
    #allocation5 [shape = 'u8[512]{0}', space=vmem, size = 0x400, scoped, tag = 'input window, operand 1, single buffered']
    #allocation6 [shape = 's32[1]{0}', space=sflag, size = 0x4, scoped, tag = 'scoped memory for tpu_custom_call.1']
    #allocation7 [shape = 'u8[4096]{0}', space=vmem, size = 0x1000, scoped, tag = 'output window, operand 0, single buffered']
    %8 = vsyncpa [#allocation3], 0
    %9 = vsyncpa [#allocation6], 0
    %10 = vsyncpa [#allocation4], 0
    // Predicated region
    $region2: #{tpu_custom_call.1} parent=1 // pred_check
      _
    $region3: #{tpu_custom_call.1} parent=1 // pred_check_branch
      %12 = sbr.rel (0) target = $region5
    $region4: #{tpu_custom_call.1} parent=1 // pred_region
      %14 = vsyncadd [#allocation3], 0
      %s15 = sshll.u32 %s0, 4
      %s16 = int_to_ptr.hbm [resolvable:$true] %s15
      %s17 = sshll.u32 [#allocation2], 4
      %s18 = int_to_ptr.vmem [resolvable:$true] %s17
      %23 = dma.hbm_to_vmem [thread:$0]  %s16, 256, %s18, [#allocation3], 128, 128, 8
    $region5: #{tpu_custom_call.1} parent=1 // pred_fallthru
      _
    // Predicated region
    $region6: #{tpu_custom_call.1} parent=1 // pred_check
      _
    $region7: #{tpu_custom_call.1} parent=1 // pred_check_branch
      %25 = sbr.rel (0) target = $region9
    $region8: #{tpu_custom_call.1} parent=1 // pred_region
      %27 = vsyncadd [#allocation6], 0
      %s29 = sshll.u32 %s1, 4
      %s30 = int_to_ptr.hbm [resolvable:$true] %s29
      %s31 = sshll.u32 [#allocation5], 4
      %s32 = int_to_ptr.vmem [resolvable:$true] %s31
      %34 = dma.hbm_to_vmem [thread:$0]  %s30, 16, %s32, [#allocation6]
    $region9: #{tpu_custom_call.1} parent=1 // pred_fallthru
      _
    // Predicated region
    $region10: #{tpu_custom_call.1} parent=1 // pred_check
      _
    $region11: #{tpu_custom_call.1} parent=1 // pred_check_branch
      %36 = sbr.rel (0) target = $region13
    $region12: #{tpu_custom_call.1} parent=1 // pred_region
      _
    $region13: #{tpu_custom_call.1} parent=1 // pred_fallthru
      _
    // Predicated region
    $region14: #{tpu_custom_call.1} parent=1 // pred_check
      _
    $region15: #{tpu_custom_call.1} parent=1 // pred_check_branch
      %38 = sbr.rel (0) target = $region17
    $region16: #{tpu_custom_call.1} parent=1 // pred_region
      %40 = dma.done [#allocation3], 256
    $region17: #{tpu_custom_call.1} parent=1 // pred_fallthru
      _
    // Predicated region
    $region18: #{tpu_custom_call.1} parent=1 // pred_check
      _
    $region19: #{tpu_custom_call.1} parent=1 // pred_check_branch
      %42 = sbr.rel (0) target = $region21
    $region20: #{tpu_custom_call.1} parent=1 // pred_region
      %44 = dma.done [#allocation6], 16
    $region21: #{tpu_custom_call.1} parent=1 // pred_fallthru
      _
    %v45 = vld [vmem:[#allocation2] sm:$0xff]
    %v46 = vld [vmem:[#allocation2 + $0x8] sm:$0xff]
    %vm47 = vcmask 261120
    %v48 = vsel %vm47, %v45, 0.0
    %49 = vadd.xlane.f32.xlu0 %v48
    %v50 = vpop.xlane.xlu0 %49
    %v51 = vsel %vm47, %v46, 0.0
    %52 = vadd.xlane.f32.xlu0 %v51
    %v53 = vpop.xlane.xlu0 %52
    %v54 = vrcp.pop 32.0
    %v55 = vmul.f32 32.0, %v54
    %v56 = vsub.f32 1.0, %v55
    %v57 = vmul.f32 %v54, %v56
    %v58 = vadd.f32 %v54, %v57
    %vm59 = vweird.f32 %v54
    %v60 = vsel %vm59, %v54, %v58
    %v61 = vmul.f32 %v50, %v60
    %v62 = vmul.f32 %v53, %v60
    %v63 = vsub.f32 %v45, %v61
    %v64 = vsub.f32 %v46, %v62
    %v65 = vmul.f32 %v63, %v63
    %v66 = vmul.f32 %v64, %v64
    %v67 = vsel %vm47, %v65, 0.0
    %68 = vadd.xlane.f32.xlu0 %v67
    %v69 = vpop.xlane.xlu0 %68
    %v70 = vsel %vm47, %v66, 0.0
    %71 = vadd.xlane.f32.xlu0 %v70
    %v72 = vpop.xlane.xlu0 %71
    %v73 = vmul.f32 %v69, %v60
    %v74 = vmul.f32 %v72, %v60
    %v75 = vadd.f32 %v73, 1e-05
    %v76 = vadd.f32 %v74, 1e-05
    %v77 = vrsqrt.pop %v75
    %v78 = vmul.f32 %v77, %v75
    %v79 = vmul.f32 %v78, %v77
    %v80 = vmul.f32 0.5, %v79
    %v81 = vsub.f32 1.5, %v80
    %v82 = vmul.f32 %v77, %v81
    %vm83 = vweird.f32 %v75
    %vm84 = vweird.f32 %v77
    %vm85 = vmor %vm83, %vm84
    %v86 = vsel %vm85, %v77, %v82
    %v87 = vrsqrt.pop %v76
    %v88 = vmul.f32 %v87, %v76
    %v89 = vmul.f32 %v88, %v87
    %v90 = vmul.f32 0.5, %v89
    %v91 = vsub.f32 1.5, %v90
    %v92 = vmul.f32 %v87, %v91
    %vm93 = vweird.f32 %v76
    %vm94 = vweird.f32 %v87
    %vm95 = vmor %vm93, %vm94
    %v96 = vsel %vm95, %v87, %v92
    %v97 = vmul.f32 %v63, %v86
    %v98 = vmul.f32 %v64, %v96
    %v99 = vld [vmem:[#allocation5] sm:$0x1]
    %v101 = vperm.slane %v99, 0
    %v103 = vmul.f32 %v97, %v101
    %v104 = vmul.f32 %v98, %v101
    %v105 = vld [vmem:[%s2] sm:$0x1]
    %v107 = vperm.slane %v105, 0
    %v109 = vadd.f32 %v103, %v107
    %v110 = vadd.f32 %v104, %v107
    %v111 = vpack.c.bf16 %v109, %v109
    %v112 = vpack.c.bf16 %v110, %v110
    %vm113 = vcmask 257024
    %114 = vst.msk [vmem:[#allocation7] sm:$0xf] %vm113, %v111
    %115 = vst.msk [vmem:[#allocation7 + $0x4] sm:$0xf] %vm113, %v112
    // Predicated region
    $region22: #{tpu_custom_call.1} parent=1 // pred_check
      _
    $region23: #{tpu_custom_call.1} parent=1 // pred_check_branch
      %117 = sbr.rel (0) target = $region25
    $region24: #{tpu_custom_call.1} parent=1 // pred_region
      %119 = vsyncadd [#allocation4], 0
      %s120 = sshll.u32 [#allocation7], 4
      %s121 = int_to_ptr.vmem [resolvable:$true] %s120
      %s122 = sshll.u32 %s3, 4
      %s123 = int_to_ptr.hbm [resolvable:$true] %s122
      %128 = dma.vmem_to_hbm [thread:$0]  %s121, 128, %s123, [#allocation4], 64, 64, 4
    $region25: #{tpu_custom_call.1} parent=1 // pred_fallthru
      _
    // Predicated region
    $region26: #{tpu_custom_call.1} parent=1 // pred_check
      _
    $region27: #{tpu_custom_call.1} parent=1 // pred_check_branch
      %130 = sbr.rel (0) target = $region29
    $region28: #{tpu_custom_call.1} parent=1 // pred_region
      %132 = dma.done [#allocation4], 128
    $region29: #{tpu_custom_call.1} parent=1 // pred_fallthru
      _
    %133 = vsyncpa [#allocation3], 1
    %134 = vsyncpa [#allocation6], 1
    %135 = vsyncpa [#allocation4], 1

</llo_original>
